<compile_context>
chip_gen: v6e
topology: v6e:2x2x1
jax: 0.10.0
libtpu: 0.0.40
codegen_flags: <defaults>
</compile_context>

<pallas_src>
import math
import functools

import jax
import jax.numpy as jnp
from jax.experimental import pallas as pl
from jax.experimental.pallas import tpu as pltpu

LEAKY_SLOPE = 0.01  # torch.nn.LeakyReLU default negative_slope
LANE = 128
SUBLANE = 8


def _round_up(x, m):
    return (x + m - 1) // m * m


def _leaky_relu(x):
    # Equivalent to LeakyReLU for slope in (0, 1); mul + max instead of cmp + select.
    return jnp.maximum(x, LEAKY_SLOPE * x)


def mlp_kernel(x_ref, w_ref, b_ref, o_ref, *, num_layers):
    # x_ref: (TB, P) bf16 activation tile       (pipelined over the batch grid)
    # w_ref: (L, P, P) bf16 packed weight slab  (resident, single-buffered)
    # b_ref: (LPAD, P) f32 packed bias slab     (resident, single-buffered)
    h = x_ref[...]                               # bf16, feeds the MXU directly
    for l in range(num_layers):                  # statically unrolled; L is tiny
        h = jnp.dot(h, w_ref[l], preferred_element_type=jnp.float32)
        h = h + b_ref[l:l + 1, :]                # (1, P) f32 bias row, broadcast add
        if l < num_layers - 1:
            h = _leaky_relu(h).astype(jnp.bfloat16)
    o_ref[...] = h.astype(o_ref.dtype)


def pack_params(params):
    """Pack [(W_i (in,out), b_i (out,))] into one lane-padded weight slab + bias slab.

    All feature dims are zero-padded to a common P (multiple of 128); zero padding
    keeps the computation exact (padded lanes stay identically zero through LeakyReLU).
    NOTE(v6e/v7x): if layer sizes ever grow >=128, pad P to a multiple of 256 to fill
    the 2x256x256 MXU; for this tiny model P=128 is the right choice everywhere.
    """
    num_layers = len(params)
    dims = [params[0][0].shape[0]] + [w.shape[1] for w, _ in params]
    p = _round_up(max(dims), LANE)
    lpad = _round_up(num_layers, SUBLANE)

    w_slab = jnp.zeros((num_layers, p, p), jnp.float32)
    b_slab = jnp.zeros((lpad, p), jnp.float32)
    for i, (w, b) in enumerate(params):
        w_slab = w_slab.at[i, : w.shape[0], : w.shape[1]].set(w)
        b_slab = b_slab.at[i, : b.shape[0]].set(b)
    return w_slab.astype(jnp.bfloat16), b_slab, p, params[-1][0].shape[1]


@functools.partial(jax.jit, static_argnames=("out_size", "block_batch"))
def fully_connected_forward(x, w_slab, b_slab, *, out_size, block_batch=512):
    """x: (batch, input_size) f32; w_slab: (L,P,P) bf16; b_slab: (LPAD,P) f32."""
    batch, in_size = x.shape
    num_layers, p, _ = w_slab.shape
    lpad = b_slab.shape[0]

    # Batch tile: as big as possible (sweep 256/512/1024), multiple of 8, but keep
    # >=2 grid steps when the batch allows so v7x's 2 TCs are both utilized.
    batch8 = _round_up(batch, SUBLANE)
    tb = min(block_batch, batch8)
    if batch8 > SUBLANE and batch8 <= tb:
        tb = _round_up((batch8 + 1) // 2, SUBLANE)
    batch_pad = _round_up(batch, tb)

    # Single pad+cast op: bf16 activations halve input HBM traffic and VMEM buffers.
    x_pad = jnp.pad(x.astype(jnp.bfloat16),
                    ((0, batch_pad - batch), (0, p - in_size)))

    out = pl.pallas_call(
        functools.partial(mlp_kernel, num_layers=num_layers),
        out_shape=jax.ShapeDtypeStruct((batch_pad, p), jnp.float32),
        grid=(batch_pad // tb,),
        in_specs=[
            # activations: tiled over the batch grid (double-buffered by default)
            pl.BlockSpec((tb, p), lambda i: (i, 0)),
            # weights / biases: constant index -> resident, single buffer is enough
            pl.BlockSpec((num_layers, p, p), lambda i: (0, 0, 0),
                         pipeline_mode=pl.Buffered(1)),
            pl.BlockSpec((lpad, p), lambda i: (0, 0),
                         pipeline_mode=pl.Buffered(1)),
        ],
        out_specs=pl.BlockSpec((tb, p), lambda i: (i, 0)),
        compiler_params=pltpu.CompilerParams(
            dimension_semantics=("parallel",),
            # Footprint is ~1 MiB at TB=512, P=128 — far below every generation's
            # scoped VMEM default; set vmem_limit_bytes here only if TB/P grow.
        ),
    )(x_pad, w_slab, b_slab)
    return out[:batch, :out_size]


def init_linear(key, in_features, out_features):
    # PyTorch-style init: U(-1/sqrt(fan_in), 1/sqrt(fan_in)); W stored (in, out).
    kw, kb = jax.random.split(key)
    bound = 1.0 / math.sqrt(in_features)
    w = jax.random.uniform(kw, (in_features, out_features), jnp.float32, -bound, bound)
    b = jax.random.uniform(kb, (out_features,), jnp.float32, -bound, bound)
    return w, b


def reference_forward_f32(x, params):
    h = x
    for i, (w, b) in enumerate(params):
        h = h @ w + b
        if i < len(params) - 1:
            h = _leaky_relu(h)
    return h


def reference_forward_mixed(x, params):
    # Mirrors the kernel's precision: bf16 matmul inputs, f32 accumulate/activations.
    h = x
    for i, (w, b) in enumerate(params):
        h = jnp.dot(h.astype(jnp.bfloat16), w.astype(jnp.bfloat16),
                    preferred_element_type=jnp.float32) + b
        if i < len(params) - 1:
            h = _leaky_relu(h)
    return h


if __name__ == "__main__":
    # FullyConnectedNetwork(input_size=32, layer_sizes=[64, 48], output_size=16)
    input_size, layer_sizes, output_size = 32, [64, 48], 16
    batch = 256  # split into 2 grid steps (TB=128) so both v7x TCs get work

    key = jax.random.PRNGKey(0)
    k_x, k1, k2, k3 = jax.random.split(key, 4)

    x = jax.random.normal(k_x, (batch, input_size), jnp.float32)
    sizes = [input_size] + layer_sizes + [output_size]
    params = [init_linear(k, sizes[i], sizes[i + 1]) for i, k in enumerate([k1, k2, k3])]

    w_slab, b_slab, _, out_size = pack_params(params)

    out = fully_connected_forward(x, w_slab, b_slab, out_size=out_size)
    out = jax.block_until_ready(out)

    assert out.shape == (batch, output_size)
    ref_mixed = reference_forward_mixed(x, params)
    ref_f32 = reference_forward_f32(x, params)
    assert jnp.allclose(out, ref_mixed, atol=1e-4, rtol=1e-4), "mismatch vs mixed-precision reference"
    assert jnp.allclose(out, ref_f32, atol=5e-2, rtol=5e-2), "mismatch vs f32 reference"

    print("KERNEL_OK")
</pallas_src>

<mosaic_0001>
module attributes {stable_mosaic.version = 11 : i64} {
  func.func @mlp_kernel(%arg0: i32, %arg1: memref<128x128xbf16, #tpu.memory_space<vmem>>, %arg2: memref<3x128x128xbf16, #tpu.memory_space<vmem>>, %arg3: memref<8x128xf32, #tpu.memory_space<vmem>>, %arg4: memref<128x128xf32, #tpu.memory_space<vmem>>) attributes {dimension_semantics = [#tpu.dimension_semantics<parallel>], iteration_bounds = array<i64: 2>, scalar_prefetch = 0 : i64, scratch_operands = 0 : i64, tpu.core_type = #tpu.core_type<tc>, window_params = [{transform_indices = @transform_0, window_bounds = array<i64: 128, 128>}, {pipeline_mode = #tpu.pipeline_mode<synchronous>, transform_indices = @transform_1, window_bounds = array<i64: 3, 128, 128>}, {pipeline_mode = #tpu.pipeline_mode<synchronous>, transform_indices = @transform_2, window_bounds = array<i64: 8, 128>}, {transform_indices = @transform_3, window_bounds = array<i64: 128, 128>}]} {
    %c0 = arith.constant 0 : index
    %c0_0 = arith.constant 0 : index
    %0 = vector.load %arg1[%c0, %c0_0] : memref<128x128xbf16, #tpu.memory_space<vmem>>, vector<128x128xbf16>
    %c0_1 = arith.constant 0 : index
    %c0_2 = arith.constant 0 : index
    %c0_3 = arith.constant 0 : index
    %1 = vector.load %arg2[%c0_1, %c0_2, %c0_3] : memref<3x128x128xbf16, #tpu.memory_space<vmem>>, vector<1x128x128xbf16>
    %2 = vector.shape_cast %1 : vector<1x128x128xbf16> to vector<128x128xbf16>
    %cst = arith.constant dense<0.000000e+00> : vector<128x128xf32>
    %3 = tpu.matmul %0, %2, %cst {dimension_numbers = #tpu.dot_dimension_numbers<[1], [0], [0], [1], [0, 0, 1, 1], [], []>} : vector<128x128xbf16>, vector<128x128xbf16>, vector<128x128xf32> -> vector<128x128xf32>
    %c0_4 = arith.constant 0 : index
    %c0_5 = arith.constant 0 : index
    %4 = vector.load %arg3[%c0_4, %c0_5] : memref<8x128xf32, #tpu.memory_space<vmem>>, vector<1x128xf32>
    %5 = vector.broadcast %4 : vector<1x128xf32> to vector<128x128xf32>
    %6 = arith.addf %3, %5 : vector<128x128xf32>
    %cst_6 = arith.constant 0.00999999977 : f32
    %7 = vector.broadcast %cst_6 : f32 to vector<128x128xf32>
    %8 = arith.mulf %7, %6 : vector<128x128xf32>
    %9 = arith.maximumf %6, %8 : vector<128x128xf32>
    %10 = arith.truncf %9 : vector<128x128xf32> to vector<128x128xbf16>
    %c1 = arith.constant 1 : index
    %c0_7 = arith.constant 0 : index
    %c0_8 = arith.constant 0 : index
    %11 = vector.load %arg2[%c1, %c0_7, %c0_8] : memref<3x128x128xbf16, #tpu.memory_space<vmem>>, vector<1x128x128xbf16>
    %12 = vector.shape_cast %11 : vector<1x128x128xbf16> to vector<128x128xbf16>
    %cst_9 = arith.constant dense<0.000000e+00> : vector<128x128xf32>
    %13 = tpu.matmul %10, %12, %cst_9 {dimension_numbers = #tpu.dot_dimension_numbers<[1], [0], [0], [1], [0, 0, 1, 1], [], []>} : vector<128x128xbf16>, vector<128x128xbf16>, vector<128x128xf32> -> vector<128x128xf32>
    %c1_10 = arith.constant 1 : index
    %c0_11 = arith.constant 0 : index
    %14 = vector.load %arg3[%c1_10, %c0_11] : memref<8x128xf32, #tpu.memory_space<vmem>>, vector<1x128xf32>
    %15 = vector.broadcast %14 : vector<1x128xf32> to vector<128x128xf32>
    %16 = arith.addf %13, %15 : vector<128x128xf32>
    %cst_12 = arith.constant 0.00999999977 : f32
    %17 = vector.broadcast %cst_12 : f32 to vector<128x128xf32>
    %18 = arith.mulf %17, %16 : vector<128x128xf32>
    %19 = arith.maximumf %16, %18 : vector<128x128xf32>
    %20 = arith.truncf %19 : vector<128x128xf32> to vector<128x128xbf16>
    %c2 = arith.constant 2 : index
    %c0_13 = arith.constant 0 : index
    %c0_14 = arith.constant 0 : index
    %21 = vector.load %arg2[%c2, %c0_13, %c0_14] : memref<3x128x128xbf16, #tpu.memory_space<vmem>>, vector<1x128x128xbf16>
    %22 = vector.shape_cast %21 : vector<1x128x128xbf16> to vector<128x128xbf16>
    %cst_15 = arith.constant dense<0.000000e+00> : vector<128x128xf32>
    %23 = tpu.matmul %20, %22, %cst_15 {dimension_numbers = #tpu.dot_dimension_numbers<[1], [0], [0], [1], [0, 0, 1, 1], [], []>} : vector<128x128xbf16>, vector<128x128xbf16>, vector<128x128xf32> -> vector<128x128xf32>
    %c2_16 = arith.constant 2 : index
    %c0_17 = arith.constant 0 : index
    %24 = vector.load %arg3[%c2_16, %c0_17] : memref<8x128xf32, #tpu.memory_space<vmem>>, vector<1x128xf32>
    %25 = vector.broadcast %24 : vector<1x128xf32> to vector<128x128xf32>
    %26 = arith.addf %23, %25 : vector<128x128xf32>
    %c0_18 = arith.constant 0 : index
    %c0_19 = arith.constant 0 : index
    %27 = vector.load %arg4[%c0_18, %c0_19] : memref<128x128xf32, #tpu.memory_space<vmem>>, vector<128x128xf32>
    tpu.vector_store %arg4[%c0_18, %c0_19], %26 {strides = array<i32>} : memref<128x128xf32, #tpu.memory_space<vmem>>, vector<128x128xf32>,
    return
  }
  func.func @transform_0(%arg0: i32) -> (i32, i32) {
    %c0_i32 = arith.constant 0 : i32
    %c0_i32_0 = arith.constant 0 : i32
    return %arg0, %c0_i32 : i32, i32
  }
  func.func @transform_1(%arg0: i32) -> (i32, i32, i32) {
    %c0_i32 = arith.constant 0 : i32
    %c0_i32_0 = arith.constant 0 : i32
    %c0_i32_1 = arith.constant 0 : i32
    %c0_i32_2 = arith.constant 0 : i32
    return %c0_i32, %c0_i32_0, %c0_i32_1 : i32, i32, i32
  }
  func.func @transform_2(%arg0: i32) -> (i32, i32) {
    %c0_i32 = arith.constant 0 : i32
    %c0_i32_0 = arith.constant 0 : i32
    %c0_i32_1 = arith.constant 0 : i32
    return %c0_i32, %c0_i32_0 : i32, i32
  }
  func.func @transform_3(%arg0: i32) -> (i32, i32) {
    %c0_i32 = arith.constant 0 : i32
    %c0_i32_0 = arith.constant 0 : i32
    return %arg0, %c0_i32 : i32, i32
  }
}

</mosaic_0001>

<llo_original>
// kernel: fully_connected_forward.1
$region0: #{fully_connected_forward.1}
  #allocation0 [shape = 'u32[]', space=smem, size = 0x4, offset = 0x4, fixed_abs, tag = 'smem constant byte address 0x4 - core index']
  #allocation1 [shape = 'u32[144,128]{1,0:T(1,128)}', space=vmem, size = 0x12000, scoped, tag = 'internal scratch']
  %s0 = inlined_call_operand.vmem [shape: bf16[256,128], index: 0, kind: input, shape index: {}]
  %s1 = inlined_call_operand.vmem [shape: bf16[3,128,128], index: 1, kind: input, shape index: {}]
  %s2 = inlined_call_operand.vmem [shape: f32[8,128], index: 2, kind: input, shape index: {}]
  %s3 = inlined_call_operand.vmem [shape: f32[256,128], index: 3, kind: output, shape index: {}]
  %s4 = sld [smem:[#allocation0]]
  $region45: #{fully_connected_forward.1} parent=0
    _
  %s6 = ssub.s32 1, %s4
  %s7 = scalar_select 0, %s6, %s4
  loop: start=0, step=1, limit=4
  $region2: #{fully_connected_forward.1} parent=0 // loop_pre_header
    _
  $region3: #{fully_connected_forward.1} parent=0 // loop_header
    %s9 = sphi 0, %s13
    %p10 = scmp.ge.s32.totalorder %s9, 4
    %s19 = sphi 0, %s21
    %s22 = sphi 0, %s19
    %s23 = sphi 0, %s22
    %s39 = sphi 0, %s23
    %s43 = sphi 0, %s43
    %s45 = sphi 0, %s43
    %s46 = sphi 0, %s45
    %s60 = sphi 0, %s46
    %s64 = sphi 0, %s64
    %s66 = sphi 0, %s64
    %s67 = sphi 0, %s66
    %s81 = sphi 0, %s67
    %s87 = sphi 0, %s89
    %s90 = sphi 0, %s87
    %s91 = sphi 0, %s90
    %s107 = sphi 0, %s91
  $region4: #{fully_connected_forward.1} parent=0 // loop_header_branch
    %12 = sbr.rel (%p10) target = $region8
  $region5: #{fully_connected_forward.1} parent=0 // loop_body
    %s14 = ssub.s32 %s9, 1
    %s15 = ssub.s32 %s9, 2
    %s16 = sadd.s32 %s9, 1
    %s17 = ssub.s32 %s9, %s16
    %p18 = scmp.eq.s32.totalorder %s17, 0
    %s20 = sadd.s32 %s19, 1
    %s21 = scalar_select %p18, %s19, %s20
    %p24 = pneg %p18
    %p25 = scmp.eq.s32.totalorder %s9, 1
    %p26 = por %p24, %p25
    %p27 = scmp.ne.s32.totalorder %s19, %s22
    %p28 = scmp.eq.s32.totalorder %s9, 0
    %p29 = por %p27, %p28
    %p30 = scmp.ne.s32.totalorder %s19, %s22
    %p31 = scmp.eq.s32.totalorder %s14, 1
    %p32 = por %p30, %p31
    %p33 = scmp.ne.s32.totalorder %s22, %s23
    %p34 = scmp.eq.s32.totalorder %s14, 0
    %p35 = por %p33, %p34
    %p36 = scmp.ne.s32.totalorder %s22, %s23
    %p37 = scmp.eq.s32.totalorder %s15, 1
    %p38 = por %p36, %p37
    %p40 = scmp.ne.s32.totalorder %s23, %s39
    %p41 = scmp.eq.s32.totalorder %s15, 0
    %p42 = por %p40, %p41
    %s44 = sadd.s32 %s43, 1
    %p47 = scmp.eq.s32.totalorder %s9, 1
    %p48 = scmp.ne.s32.totalorder %s43, %s45
    %p49 = scmp.eq.s32.totalorder %s9, 0
    %p50 = por %p48, %p49
    %p51 = scmp.ne.s32.totalorder %s43, %s45
    %p52 = scmp.eq.s32.totalorder %s14, 1
    %p53 = por %p51, %p52
    %p54 = scmp.ne.s32.totalorder %s45, %s46
    %p55 = scmp.eq.s32.totalorder %s14, 0
    %p56 = por %p54, %p55
    %p57 = scmp.ne.s32.totalorder %s45, %s46
    %p58 = scmp.eq.s32.totalorder %s15, 1
    %p59 = por %p57, %p58
    %p61 = scmp.ne.s32.totalorder %s46, %s60
    %p62 = scmp.eq.s32.totalorder %s15, 0
    %p63 = por %p61, %p62
    %s65 = sadd.s32 %s64, 1
    %p68 = scmp.eq.s32.totalorder %s9, 1
    %p69 = scmp.ne.s32.totalorder %s64, %s66
    %p70 = scmp.eq.s32.totalorder %s9, 0
    %p71 = por %p69, %p70
    %p72 = scmp.ne.s32.totalorder %s64, %s66
    %p73 = scmp.eq.s32.totalorder %s14, 1
    %p74 = por %p72, %p73
    %p75 = scmp.ne.s32.totalorder %s66, %s67
    %p76 = scmp.eq.s32.totalorder %s14, 0
    %p77 = por %p75, %p76
    %p78 = scmp.ne.s32.totalorder %s66, %s67
    %p79 = scmp.eq.s32.totalorder %s15, 1
    %p80 = por %p78, %p79
    %p82 = scmp.ne.s32.totalorder %s67, %s81
    %p83 = scmp.eq.s32.totalorder %s15, 0
    %p84 = por %p82, %p83
    %s85 = ssub.s32 %s9, %s16
    %p86 = scmp.eq.s32.totalorder %s85, 0
    %s88 = sadd.s32 %s87, 1
    %s89 = scalar_select %p86, %s87, %s88
    %p92 = pneg %p86
    %p93 = scmp.eq.s32.totalorder %s9, 1
    %p94 = por %p92, %p93
    %p95 = scmp.ne.s32.totalorder %s87, %s90
    %p96 = scmp.eq.s32.totalorder %s9, 0
    %p97 = por %p95, %p96
    %p98 = scmp.ne.s32.totalorder %s87, %s90
    %p99 = scmp.eq.s32.totalorder %s14, 1
    %p100 = por %p98, %p99
    %p101 = scmp.ne.s32.totalorder %s90, %s91
    %p102 = scmp.eq.s32.totalorder %s14, 0
    %p103 = por %p101, %p102
    %p104 = scmp.ne.s32.totalorder %s90, %s91
    %p105 = scmp.eq.s32.totalorder %s15, 1
    %p106 = por %p104, %p105
    %p108 = scmp.ne.s32.totalorder %s91, %s107
    %p109 = scmp.eq.s32.totalorder %s15, 0
    %p110 = por %p108, %p109
    %p111 = scmp.le.s32.totalorder 1, %s9
    %p112 = scmp.lt.s32.totalorder %s9, 3
    %p113 = pnand %p111, %p112
    %p114 = pneg %p113
    // Predicated region
    $region9: #{fully_connected_forward.1} parent=5 // pred_check
      _
    $region10: #{fully_connected_forward.1} parent=5 // pred_check_branch
      %116 = sbr.rel (%p113) target = $region12
    $region11: #{fully_connected_forward.1} parent=5 // pred_region
      %s117 = ssub.s32 %s9, 1
      // Predicated region
      $region13: #{fully_connected_forward.1} parent=11 // pred_check
        %p118 = pneg %p56
      $region14: #{fully_connected_forward.1} parent=11 // pred_check_branch
        %120 = sbr.rel (%p118) target = $region16
      $region15: #{fully_connected_forward.1} parent=11 // pred_region
        _
      $region16: #{fully_connected_forward.1} parent=11 // pred_fallthru
        _
      // Predicated region
      $region17: #{fully_connected_forward.1} parent=11 // pred_check
        %p121 = pneg %p77
      $region18: #{fully_connected_forward.1} parent=11 // pred_check_branch
        %123 = sbr.rel (%p121) target = $region20
      $region19: #{fully_connected_forward.1} parent=11 // pred_region
        _
      $region20: #{fully_connected_forward.1} parent=11 // pred_fallthru
        _
    $region12: #{fully_connected_forward.1} parent=5 // pred_fallthru
      _
    %p124 = scmp.lt.s32.totalorder %s9, 2
    // Predicated region
    $region21: #{fully_connected_forward.1} parent=5 // pred_check
      %p125 = pneg %p124
    $region22: #{fully_connected_forward.1} parent=5 // pred_check_branch
      %127 = sbr.rel (%p125) target = $region24
    $region23: #{fully_connected_forward.1} parent=5 // pred_region
      // Predicated region
      $region25: #{fully_connected_forward.1} parent=23 // pred_check
        %p128 = pneg %p29
      $region26: #{fully_connected_forward.1} parent=23 // pred_check_branch
        %130 = sbr.rel (%p128) target = $region28
      $region27: #{fully_connected_forward.1} parent=23 // pred_region
        %s131 = smul.u32 16, %s9
        %p132 = scmp.lt.s32.totalorder %s131, 31
        %s133 = scalar_select %p132, %s131, 31
        %s134 = smul.addr %s133, 4
        %s135 = scalar_lea.vmem %s0, %s134
        %s136 = smul.u32 16, %s9
      $region28: #{fully_connected_forward.1} parent=23 // pred_fallthru
        _
    $region24: #{fully_connected_forward.1} parent=5 // pred_fallthru
      _
    %p137 = scmp.le.s32.totalorder 1, %s9
    %p138 = scmp.lt.s32.totalorder %s9, 3
    %p139 = pnand %p137, %p138
    %p140 = pneg %p139
    // Predicated region
    $region29: #{fully_connected_forward.1} parent=5 // pred_check
      _
    $region30: #{fully_connected_forward.1} parent=5 // pred_check_branch
      %142 = sbr.rel (%p139) target = $region32
    $region31: #{fully_connected_forward.1} parent=5 // pred_region
      %s143 = ssub.s32 %s9, 1
      %s144 = smul.u32 16, %s14
      %p145 = scmp.lt.s32.totalorder %s144, 31
      %s146 = scalar_select %p145, %s144, 31
      %s147 = smul.addr %s146, 4
      %s148 = scalar_lea.vmem %s0, %s147
      %p149 = pneg %p35
      %p150 = pneg %p32
      %p151 = pneg %p56
      %p152 = pneg %p53
      %p153 = pneg %p77
      %p154 = pneg %p74
      %p155 = pneg %p103
      %p156 = pneg %p100
      %s157 = smul.u32 16, %s14
      %p158 = scmp.lt.s32.totalorder %s157, 31
      %s159 = scalar_select %p158, %s157, 31
      %s160 = smul.addr %s159, 8
      %s161 = scalar_lea.vmem %s3, %s160
      %s162 = smul.u32 16, %s14
      %p163 = scmp.lt.s32.totalorder %s162, 31
      %s164 = scalar_select %p163, %s162, 31
      %s165 = smul.addr %s164, 4
      %s166 = scalar_lea.vmem %s0, %s165
      %s167 = smul.u32 16, %s14
      %s168 = smul.u32 16, %s14
      %p169 = scmp.lt.s32.totalorder %s168, 31
      %s170 = scalar_select %p169, %s168, 31
      %s171 = smul.addr %s170, 8
      %s172 = scalar_lea.vmem %s3, %s171
      %s173 = smul.u32 16, %s14
      %v175 = vld [vmem:[%s166] sm:$0xf]
      %v176 = vld [vmem:[%s166 + $0x4] sm:$0xf]
      %v177 = vld [vmem:[%s166 + $0x8] sm:$0xf]
      %v178 = vld [vmem:[%s166 + $0xc] sm:$0xf]
      %v179 = vld [vmem:[%s166 + $0x10] sm:$0xf]
      %v180 = vld [vmem:[%s166 + $0x14] sm:$0xf]
      %v181 = vld [vmem:[%s166 + $0x18] sm:$0xf]
      %v182 = vld [vmem:[%s166 + $0x1c] sm:$0xf]
      %v183 = vld [vmem:[%s166 + $0x20] sm:$0xf]
      %v184 = vld [vmem:[%s166 + $0x24] sm:$0xf]
      %v185 = vld [vmem:[%s166 + $0x28] sm:$0xf]
      %v186 = vld [vmem:[%s166 + $0x2c] sm:$0xf]
      %v187 = vld [vmem:[%s166 + $0x30] sm:$0xf]
      %v188 = vld [vmem:[%s166 + $0x34] sm:$0xf]
      %v189 = vld [vmem:[%s166 + $0x38] sm:$0xf]
      %v190 = vld [vmem:[%s166 + $0x3c] sm:$0xf]
      %v191 = vld [vmem:[%s1] sm:$0xf]
      %v192 = vld [vmem:[%s1 + $0x4] sm:$0xf]
      %v193 = vld [vmem:[%s1 + $0x8] sm:$0xf]
      %v194 = vld [vmem:[%s1 + $0xc] sm:$0xf]
      %v195 = vld [vmem:[%s1 + $0x10] sm:$0xf]
      %v196 = vld [vmem:[%s1 + $0x14] sm:$0xf]
      %v197 = vld [vmem:[%s1 + $0x18] sm:$0xf]
      %v198 = vld [vmem:[%s1 + $0x1c] sm:$0xf]
      %v199 = vld [vmem:[%s1 + $0x20] sm:$0xf]
      %v200 = vld [vmem:[%s1 + $0x24] sm:$0xf]
      %v201 = vld [vmem:[%s1 + $0x28] sm:$0xf]
      %v202 = vld [vmem:[%s1 + $0x2c] sm:$0xf]
      %v203 = vld [vmem:[%s1 + $0x30] sm:$0xf]
      %v204 = vld [vmem:[%s1 + $0x34] sm:$0xf]
      %v205 = vld [vmem:[%s1 + $0x38] sm:$0xf]
      %v206 = vld [vmem:[%s1 + $0x3c] sm:$0xf]
      %v207 = vld [vmem:[%s2] sm:$0x1]
      %v208 = vlaneseq
      %v209 = vshrl.u32 %v208, 7
      %v210 = vsub.s32 0, %v209
      %v211 = vrot.slane %v207, %v210
      %v228 = vunpack.c.l.b16 %v175
      %v229 = vunpack.c.l.b16 %v176
      %v230 = vunpack.c.l.b16 %v177
      %v231 = vunpack.c.l.b16 %v178
      %v232 = vunpack.c.l.b16 %v179
      %v233 = vunpack.c.l.b16 %v180
      %v234 = vunpack.c.l.b16 %v181
      %v235 = vunpack.c.l.b16 %v182
      %v236 = vunpack.c.l.b16 %v183
      %v237 = vunpack.c.l.b16 %v184
      %v238 = vunpack.c.l.b16 %v185
      %v239 = vunpack.c.l.b16 %v186
      %v240 = vunpack.c.l.b16 %v187
      %v241 = vunpack.c.l.b16 %v188
      %v242 = vunpack.c.l.b16 %v189
      %v243 = vunpack.c.l.b16 %v190
      %v244 = vpack.c.b16 %v229, %v228
      %v245 = vpack.c.b16 %v231, %v230
      %v246 = vpack.c.b16 %v233, %v232
      %v247 = vpack.c.b16 %v235, %v234
      %v248 = vpack.c.b16 %v237, %v236
      %v249 = vpack.c.b16 %v239, %v238
      %v250 = vpack.c.b16 %v241, %v240
      %v251 = vpack.c.b16 %v243, %v242
      %v276 = vunpack.c.l.b16 %v191
      %v277 = vunpack.c.l.b16 %v192
      %v278 = vunpack.c.l.b16 %v193
      %v279 = vunpack.c.l.b16 %v194
      %v280 = vunpack.c.l.b16 %v195
      %v281 = vunpack.c.l.b16 %v196
      %v282 = vunpack.c.l.b16 %v197
      %v283 = vunpack.c.l.b16 %v198
      %v284 = vunpack.c.l.b16 %v199
      %v285 = vunpack.c.l.b16 %v200
      %v286 = vunpack.c.l.b16 %v201
      %v287 = vunpack.c.l.b16 %v202
      %v288 = vunpack.c.l.b16 %v203
      %v289 = vunpack.c.l.b16 %v204
      %v290 = vunpack.c.l.b16 %v205
      %v291 = vunpack.c.l.b16 %v206
      %v292 = vpack.c.b16 %v277, %v276
      %v293 = vpack.c.b16 %v279, %v278
      %v294 = vpack.c.b16 %v281, %v280
      %v295 = vpack.c.b16 %v283, %v282
      %v296 = vpack.c.b16 %v285, %v284
      %v297 = vpack.c.b16 %v287, %v286
      %v298 = vpack.c.b16 %v289, %v288
      %v299 = vpack.c.b16 %v291, %v290
      %308 = vmatprep.subr.bf16.mxu0 0
      %309 = vmatpush1.bf16.msra.mxu0 %v299
      %310 = vmatprep.subr.bf16.mxu0 0
      %311 = vmatpush1.bf16.msra.mxu0 %v298
      %312 = vmatprep.subr.bf16.mxu0 0
      %313 = vmatpush1.bf16.msra.mxu0 %v297
      %314 = vmatprep.subr.bf16.mxu0 0
      %315 = vmatpush1.bf16.msra.mxu0 %v296
      %316 = vmatprep.subr.bf16.mxu0 0
      %317 = vmatpush1.bf16.msra.mxu0 %v295
      %318 = vmatprep.subr.bf16.mxu0 0
      %319 = vmatpush1.bf16.msra.mxu0 %v294
      %320 = vmatprep.subr.bf16.mxu0 0
      %321 = vmatpush1.bf16.msra.mxu0 %v293
      %322 = vmatprep.subr.bf16.mxu0 0
      %323 = vmatpush1.bf16.msra.mxu0 %v292
      %324 = vmatprep.subr.bf16.mxu0 0
      %325 = vmatpush2.bf16.msra.mxu0 0
      %326 = vmatprep.subr.bf16.mxu0 0
      %327 = vmatpush2.bf16.msra.mxu0 0
      %328 = vmatprep.subr.bf16.mxu0 0
      %329 = vmatpush2.bf16.msra.mxu0 0
      %330 = vmatprep.subr.bf16.mxu0 0
      %331 = vmatpush2.bf16.msra.mxu0 0
      %332 = vmatprep.subr.bf16.mxu0 0
      %333 = vmatpush2.bf16.msra.mxu0 0
      %334 = vmatprep.subr.bf16.mxu0 0
      %335 = vmatpush2.bf16.msra.mxu0 0
      %336 = vmatprep.subr.bf16.mxu0 0
      %337 = vmatpush2.bf16.msra.mxu0 0
      %338 = vmatprep.subr.bf16.mxu0 0
      %339 = vmatpush2.bf16.msra.mxu0 0
      %340 = vmatprep.mubr.bf16.mxu0 0
      %341 = vmatmul.mubr.bf16.gmra.mxu0 %v244
      %v342 = vpop.f32.mrf.mxu0
      %v343 = vadd.f32 %v211, %v342
      %v344 = vpop.f32.mrf.mxu0
      %v345 = vpop.f32.mrf.mxu0
      %v346 = vadd.f32 %v211, %v345
      %v347 = vpop.f32.mrf.mxu0
      %348 = vmatprep.mubr.bf16.mxu0 0
      %349 = vmatmul.mubr.bf16.gmra.mxu0 %v245
      %v350 = vpop.f32.mrf.mxu0
      %v351 = vadd.f32 %v211, %v350
      %v352 = vpop.f32.mrf.mxu0
      %v353 = vpop.f32.mrf.mxu0
      %v354 = vadd.f32 %v211, %v353
      %v355 = vpop.f32.mrf.mxu0
      %356 = vmatprep.mubr.bf16.mxu0 0
      %357 = vmatmul.mubr.bf16.gmra.mxu0 %v246
      %v358 = vpop.f32.mrf.mxu0
      %v359 = vadd.f32 %v211, %v358
      %v360 = vpop.f32.mrf.mxu0
      %v361 = vpop.f32.mrf.mxu0
      %v362 = vadd.f32 %v211, %v361
      %v363 = vpop.f32.mrf.mxu0
      %364 = vmatprep.mubr.bf16.mxu0 0
      %365 = vmatmul.mubr.bf16.gmra.mxu0 %v247
      %v366 = vpop.f32.mrf.mxu0
      %v367 = vadd.f32 %v211, %v366
      %v368 = vpop.f32.mrf.mxu0
      %v369 = vpop.f32.mrf.mxu0
      %v370 = vadd.f32 %v211, %v369
      %v371 = vpop.f32.mrf.mxu0
      %372 = vmatprep.mubr.bf16.mxu0 0
      %373 = vmatmul.mubr.bf16.gmra.mxu0 %v248
      %v374 = vpop.f32.mrf.mxu0
      %v375 = vadd.f32 %v211, %v374
      %v376 = vpop.f32.mrf.mxu0
      %v377 = vpop.f32.mrf.mxu0
      %v378 = vadd.f32 %v211, %v377
      %v379 = vpop.f32.mrf.mxu0
      %380 = vmatprep.mubr.bf16.mxu0 0
      %381 = vmatmul.mubr.bf16.gmra.mxu0 %v249
      %v382 = vpop.f32.mrf.mxu0
      %v383 = vadd.f32 %v211, %v382
      %v384 = vpop.f32.mrf.mxu0
      %v385 = vpop.f32.mrf.mxu0
      %v386 = vadd.f32 %v211, %v385
      %v387 = vpop.f32.mrf.mxu0
      %388 = vmatprep.mubr.bf16.mxu0 0
      %389 = vmatmul.mubr.bf16.gmra.mxu0 %v250
      %v390 = vpop.f32.mrf.mxu0
      %v391 = vadd.f32 %v211, %v390
      %v392 = vpop.f32.mrf.mxu0
      %v393 = vpop.f32.mrf.mxu0
      %v394 = vadd.f32 %v211, %v393
      %v395 = vpop.f32.mrf.mxu0
      %396 = vmatprep.mubr.bf16.mxu0 0
      %397 = vmatmul.mubr.bf16.gmra.mxu0 %v251
      %v398 = vpop.f32.mrf.mxu0
      %v399 = vadd.f32 %v211, %v398
      %v400 = vpop.f32.mrf.mxu0
      %v401 = vpop.f32.mrf.mxu0
      %v402 = vadd.f32 %v211, %v401
      %v403 = vpop.f32.mrf.mxu0
      %404 = vdwg.mxu0
      %v405 = vmul.f32 %v343, 0.01
      %v406 = vmul.f32 %v346, 0.01
      %v407 = vmul.f32 %v351, 0.01
      %v408 = vmul.f32 %v354, 0.01
      %v409 = vmul.f32 %v359, 0.01
      %v410 = vmul.f32 %v362, 0.01
      %v411 = vmul.f32 %v367, 0.01
      %v412 = vmul.f32 %v370, 0.01
      %v413 = vmul.f32 %v375, 0.01
      %v414 = vmul.f32 %v378, 0.01
      %v415 = vmul.f32 %v383, 0.01
      %v416 = vmul.f32 %v386, 0.01
      %v417 = vmul.f32 %v391, 0.01
      %v418 = vmul.f32 %v394, 0.01
      %v419 = vmul.f32 %v399, 0.01
      %v420 = vmul.f32 %v402, 0.01
      %v421 = vmax.f32 %v343, %v405
      %v422 = vmax.f32 %v346, %v406
      %v423 = vmax.f32 %v351, %v407
      %v424 = vmax.f32 %v354, %v408
      %v425 = vmax.f32 %v359, %v409
      %v426 = vmax.f32 %v362, %v410
      %v427 = vmax.f32 %v367, %v411
      %v428 = vmax.f32 %v370, %v412
      %v429 = vmax.f32 %v375, %v413
      %v430 = vmax.f32 %v378, %v414
      %v431 = vmax.f32 %v383, %v415
      %v432 = vmax.f32 %v386, %v416
      %v433 = vmax.f32 %v391, %v417
      %v434 = vmax.f32 %v394, %v418
      %v435 = vmax.f32 %v399, %v419
      %v436 = vmax.f32 %v402, %v420
      %v437 = vpack.c.bf16 %v422, %v421
      %v438 = vpack.c.bf16 %v424, %v423
      %v439 = vpack.c.bf16 %v426, %v425
      %v440 = vpack.c.bf16 %v428, %v427
      %v441 = vpack.c.bf16 %v430, %v429
      %v442 = vpack.c.bf16 %v432, %v431
      %v443 = vpack.c.bf16 %v434, %v433
      %v444 = vpack.c.bf16 %v436, %v435
      %s445 = scalar_lea.vmem %s1, 64
      %v446 = vld [vmem:[%s445] sm:$0xf]
      %v447 = vld [vmem:[%s445 + $0x4] sm:$0xf]
      %v448 = vld [vmem:[%s445 + $0x8] sm:$0xf]
      %v449 = vld [vmem:[%s445 + $0xc] sm:$0xf]
      %v450 = vld [vmem:[%s445 + $0x10] sm:$0xf]
      %v451 = vld [vmem:[%s445 + $0x14] sm:$0xf]
      %v452 = vld [vmem:[%s445 + $0x18] sm:$0xf]
      %v453 = vld [vmem:[%s445 + $0x1c] sm:$0xf]
      %v454 = vld [vmem:[%s445 + $0x20] sm:$0xf]
      %v455 = vld [vmem:[%s445 + $0x24] sm:$0xf]
      %v456 = vld [vmem:[%s445 + $0x28] sm:$0xf]
      %v457 = vld [vmem:[%s445 + $0x2c] sm:$0xf]
      %v458 = vld [vmem:[%s445 + $0x30] sm:$0xf]
      %v459 = vld [vmem:[%s445 + $0x34] sm:$0xf]
      %v460 = vld [vmem:[%s445 + $0x38] sm:$0xf]
      %v461 = vld [vmem:[%s445 + $0x3c] sm:$0xf]
      %v462 = vld [vmem:[%s2 + $0x1] sm:$0x1]
      %v463 = vlaneseq
      %v464 = vshrl.u32 %v463, 7
      %v465 = vsub.s32 0, %v464
      %v466 = vrot.slane %v462, %v465
      %v483 = vunpack.c.l.b16 %v446
      %v484 = vunpack.c.l.b16 %v447
      %v485 = vunpack.c.l.b16 %v448
      %v486 = vunpack.c.l.b16 %v449
      %v487 = vunpack.c.l.b16 %v450
      %v488 = vunpack.c.l.b16 %v451
      %v489 = vunpack.c.l.b16 %v452
      %v490 = vunpack.c.l.b16 %v453
      %v491 = vunpack.c.l.b16 %v454
      %v492 = vunpack.c.l.b16 %v455
      %v493 = vunpack.c.l.b16 %v456
      %v494 = vunpack.c.l.b16 %v457
      %v495 = vunpack.c.l.b16 %v458
      %v496 = vunpack.c.l.b16 %v459
      %v497 = vunpack.c.l.b16 %v460
      %v498 = vunpack.c.l.b16 %v461
      %v499 = vpack.c.b16 %v484, %v483
      %v500 = vpack.c.b16 %v486, %v485
      %v501 = vpack.c.b16 %v488, %v487
      %v502 = vpack.c.b16 %v490, %v489
      %v503 = vpack.c.b16 %v492, %v491
      %v504 = vpack.c.b16 %v494, %v493
      %v505 = vpack.c.b16 %v496, %v495
      %v506 = vpack.c.b16 %v498, %v497
      %515 = vmatprep.subr.bf16.mxu0 0
      %516 = vmatpush1.bf16.msra.mxu0 %v506
      %517 = vmatprep.subr.bf16.mxu0 0
      %518 = vmatpush1.bf16.msra.mxu0 %v505
      %519 = vmatprep.subr.bf16.mxu0 0
      %520 = vmatpush1.bf16.msra.mxu0 %v504
      %521 = vmatprep.subr.bf16.mxu0 0
      %522 = vmatpush1.bf16.msra.mxu0 %v503
      %523 = vmatprep.subr.bf16.mxu0 0
      %524 = vmatpush1.bf16.msra.mxu0 %v502
      %525 = vmatprep.subr.bf16.mxu0 0
      %526 = vmatpush1.bf16.msra.mxu0 %v501
      %527 = vmatprep.subr.bf16.mxu0 0
      %528 = vmatpush1.bf16.msra.mxu0 %v500
      %529 = vmatprep.subr.bf16.mxu0 0
      %530 = vmatpush1.bf16.msra.mxu0 %v499
      %531 = vmatprep.subr.bf16.mxu0 0
      %532 = vmatpush2.bf16.msra.mxu0 0
      %533 = vmatprep.subr.bf16.mxu0 0
      %534 = vmatpush2.bf16.msra.mxu0 0
      %535 = vmatprep.subr.bf16.mxu0 0
      %536 = vmatpush2.bf16.msra.mxu0 0
      %537 = vmatprep.subr.bf16.mxu0 0
      %538 = vmatpush2.bf16.msra.mxu0 0
      %539 = vmatprep.subr.bf16.mxu0 0
      %540 = vmatpush2.bf16.msra.mxu0 0
      %541 = vmatprep.subr.bf16.mxu0 0
      %542 = vmatpush2.bf16.msra.mxu0 0
      %543 = vmatprep.subr.bf16.mxu0 0
      %544 = vmatpush2.bf16.msra.mxu0 0
      %545 = vmatprep.subr.bf16.mxu0 0
      %546 = vmatpush2.bf16.msra.mxu0 0
      %547 = vmatprep.mubr.bf16.mxu0 0
      %548 = vmatmul.mubr.bf16.gmra.mxu0 %v437
      %v549 = vpop.f32.mrf.mxu0
      %v550 = vadd.f32 %v466, %v549
      %v551 = vpop.f32.mrf.mxu0
      %v552 = vpop.f32.mrf.mxu0
      %v553 = vadd.f32 %v466, %v552
      %v554 = vpop.f32.mrf.mxu0
      %555 = vmatprep.mubr.bf16.mxu0 0
      %556 = vmatmul.mubr.bf16.gmra.mxu0 %v438
      %v557 = vpop.f32.mrf.mxu0
      %v558 = vadd.f32 %v466, %v557
      %v559 = vpop.f32.mrf.mxu0
      %v560 = vpop.f32.mrf.mxu0
      %v561 = vadd.f32 %v466, %v560
      %v562 = vpop.f32.mrf.mxu0
      %563 = vmatprep.mubr.bf16.mxu0 0
      %564 = vmatmul.mubr.bf16.gmra.mxu0 %v439
      %v565 = vpop.f32.mrf.mxu0
      %v566 = vadd.f32 %v466, %v565
      %v567 = vpop.f32.mrf.mxu0
      %v568 = vpop.f32.mrf.mxu0
      %v569 = vadd.f32 %v466, %v568
      %v570 = vpop.f32.mrf.mxu0
      %571 = vmatprep.mubr.bf16.mxu0 0
      %572 = vmatmul.mubr.bf16.gmra.mxu0 %v440
      %v573 = vpop.f32.mrf.mxu0
      %v574 = vadd.f32 %v466, %v573
      %v575 = vpop.f32.mrf.mxu0
      %v576 = vpop.f32.mrf.mxu0
      %v577 = vadd.f32 %v466, %v576
      %v578 = vpop.f32.mrf.mxu0
      %579 = vmatprep.mubr.bf16.mxu0 0
      %580 = vmatmul.mubr.bf16.gmra.mxu0 %v441
      %v581 = vpop.f32.mrf.mxu0
      %v582 = vadd.f32 %v466, %v581
      %v583 = vpop.f32.mrf.mxu0
      %v584 = vpop.f32.mrf.mxu0
      %v585 = vadd.f32 %v466, %v584
      %v586 = vpop.f32.mrf.mxu0
      %587 = vmatprep.mubr.bf16.mxu0 0
      %588 = vmatmul.mubr.bf16.gmra.mxu0 %v442
      %v589 = vpop.f32.mrf.mxu0
      %v590 = vadd.f32 %v466, %v589
      %v591 = vpop.f32.mrf.mxu0
      %v592 = vpop.f32.mrf.mxu0
      %v593 = vadd.f32 %v466, %v592
      %v594 = vpop.f32.mrf.mxu0
      %595 = vmatprep.mubr.bf16.mxu0 0
      %596 = vmatmul.mubr.bf16.gmra.mxu0 %v443
      %v597 = vpop.f32.mrf.mxu0
      %v598 = vadd.f32 %v466, %v597
      %v599 = vpop.f32.mrf.mxu0
      %v600 = vpop.f32.mrf.mxu0
      %v601 = vadd.f32 %v466, %v600
      %v602 = vpop.f32.mrf.mxu0
      %603 = vmatprep.mubr.bf16.mxu0 0
      %604 = vmatmul.mubr.bf16.gmra.mxu0 %v444
      %v605 = vpop.f32.mrf.mxu0
      %v606 = vadd.f32 %v466, %v605
      %v607 = vpop.f32.mrf.mxu0
      %v608 = vpop.f32.mrf.mxu0
      %v609 = vadd.f32 %v466, %v608
      %v610 = vpop.f32.mrf.mxu0
      %611 = vdwg.mxu0
      %v612 = vmul.f32 %v550, 0.01
      %v613 = vmul.f32 %v553, 0.01
      %v614 = vmul.f32 %v558, 0.01
      %v615 = vmul.f32 %v561, 0.01
      %v616 = vmul.f32 %v566, 0.01
      %v617 = vmul.f32 %v569, 0.01
      %v618 = vmul.f32 %v574, 0.01
      %v619 = vmul.f32 %v577, 0.01
      %v620 = vmul.f32 %v582, 0.01
      %v621 = vmul.f32 %v585, 0.01
      %v622 = vmul.f32 %v590, 0.01
      %v623 = vmul.f32 %v593, 0.01
      %v624 = vmul.f32 %v598, 0.01
      %v625 = vmul.f32 %v601, 0.01
      %v626 = vmul.f32 %v606, 0.01
      %v627 = vmul.f32 %v609, 0.01
      %v628 = vmax.f32 %v550, %v612
      %v629 = vmax.f32 %v553, %v613
      %v630 = vmax.f32 %v558, %v614
      %v631 = vmax.f32 %v561, %v615
      %v632 = vmax.f32 %v566, %v616
      %v633 = vmax.f32 %v569, %v617
      %v634 = vmax.f32 %v574, %v618
      %v635 = vmax.f32 %v577, %v619
      %v636 = vmax.f32 %v582, %v620
      %v637 = vmax.f32 %v585, %v621
      %v638 = vmax.f32 %v590, %v622
      %v639 = vmax.f32 %v593, %v623
      %v640 = vmax.f32 %v598, %v624
      %v641 = vmax.f32 %v601, %v625
      %v642 = vmax.f32 %v606, %v626
      %v643 = vmax.f32 %v609, %v627
      %v644 = vpack.c.bf16 %v629, %v628
      %v645 = vpack.c.bf16 %v631, %v630
      %v646 = vpack.c.bf16 %v633, %v632
      %v647 = vpack.c.bf16 %v635, %v634
      %v648 = vpack.c.bf16 %v637, %v636
      %v649 = vpack.c.bf16 %v639, %v638
      %v650 = vpack.c.bf16 %v641, %v640
      %v651 = vpack.c.bf16 %v643, %v642
      %s652 = scalar_lea.vmem %s1, 128
      %v653 = vld [vmem:[%s652] sm:$0xf]
      %v654 = vld [vmem:[%s652 + $0x4] sm:$0xf]
      %v655 = vld [vmem:[%s652 + $0x8] sm:$0xf]
      %v656 = vld [vmem:[%s652 + $0xc] sm:$0xf]
      %v657 = vld [vmem:[%s652 + $0x10] sm:$0xf]
      %v658 = vld [vmem:[%s652 + $0x14] sm:$0xf]
      %v659 = vld [vmem:[%s652 + $0x18] sm:$0xf]
      %v660 = vld [vmem:[%s652 + $0x1c] sm:$0xf]
      %v661 = vld [vmem:[%s652 + $0x20] sm:$0xf]
      %v662 = vld [vmem:[%s652 + $0x24] sm:$0xf]
      %v663 = vld [vmem:[%s652 + $0x28] sm:$0xf]
      %v664 = vld [vmem:[%s652 + $0x2c] sm:$0xf]
      %v665 = vld [vmem:[%s652 + $0x30] sm:$0xf]
      %v666 = vld [vmem:[%s652 + $0x34] sm:$0xf]
      %v667 = vld [vmem:[%s652 + $0x38] sm:$0xf]
      %v668 = vld [vmem:[%s652 + $0x3c] sm:$0xf]
      %v669 = vld [vmem:[%s2 + $0x2] sm:$0x1]
      %v670 = vlaneseq
      %v671 = vshrl.u32 %v670, 7
      %v672 = vsub.s32 0, %v671
      %v673 = vrot.slane %v669, %v672
      %v690 = vunpack.c.l.b16 %v653
      %v691 = vunpack.c.l.b16 %v654
      %v692 = vunpack.c.l.b16 %v655
      %v693 = vunpack.c.l.b16 %v656
      %v694 = vunpack.c.l.b16 %v657
      %v695 = vunpack.c.l.b16 %v658
      %v696 = vunpack.c.l.b16 %v659
      %v697 = vunpack.c.l.b16 %v660
      %v698 = vunpack.c.l.b16 %v661
      %v699 = vunpack.c.l.b16 %v662
      %v700 = vunpack.c.l.b16 %v663
      %v701 = vunpack.c.l.b16 %v664
      %v702 = vunpack.c.l.b16 %v665
      %v703 = vunpack.c.l.b16 %v666
      %v704 = vunpack.c.l.b16 %v667
      %v705 = vunpack.c.l.b16 %v668
      %v706 = vpack.c.b16 %v691, %v690
      %v707 = vpack.c.b16 %v693, %v692
      %v708 = vpack.c.b16 %v695, %v694
      %v709 = vpack.c.b16 %v697, %v696
      %v710 = vpack.c.b16 %v699, %v698
      %v711 = vpack.c.b16 %v701, %v700
      %v712 = vpack.c.b16 %v703, %v702
      %v713 = vpack.c.b16 %v705, %v704
      %722 = vmatprep.subr.bf16.mxu0 0
      %723 = vmatpush1.bf16.msra.mxu0 %v713
      %724 = vmatprep.subr.bf16.mxu0 0
      %725 = vmatpush1.bf16.msra.mxu0 %v712
      %726 = vmatprep.subr.bf16.mxu0 0
      %727 = vmatpush1.bf16.msra.mxu0 %v711
      %728 = vmatprep.subr.bf16.mxu0 0
      %729 = vmatpush1.bf16.msra.mxu0 %v710
      %730 = vmatprep.subr.bf16.mxu0 0
      %731 = vmatpush1.bf16.msra.mxu0 %v709
      %732 = vmatprep.subr.bf16.mxu0 0
      %733 = vmatpush1.bf16.msra.mxu0 %v708
      %734 = vmatprep.subr.bf16.mxu0 0
      %735 = vmatpush1.bf16.msra.mxu0 %v707
      %736 = vmatprep.subr.bf16.mxu0 0
      %737 = vmatpush1.bf16.msra.mxu0 %v706
      %738 = vmatprep.subr.bf16.mxu0 0
      %739 = vmatpush2.bf16.msra.mxu0 0
      %740 = vmatprep.subr.bf16.mxu0 0
      %741 = vmatpush2.bf16.msra.mxu0 0
      %742 = vmatprep.subr.bf16.mxu0 0
      %743 = vmatpush2.bf16.msra.mxu0 0
      %744 = vmatprep.subr.bf16.mxu0 0
      %745 = vmatpush2.bf16.msra.mxu0 0
      %746 = vmatprep.subr.bf16.mxu0 0
      %747 = vmatpush2.bf16.msra.mxu0 0
      %748 = vmatprep.subr.bf16.mxu0 0
      %749 = vmatpush2.bf16.msra.mxu0 0
      %750 = vmatprep.subr.bf16.mxu0 0
      %751 = vmatpush2.bf16.msra.mxu0 0
      %752 = vmatprep.subr.bf16.mxu0 0
      %753 = vmatpush2.bf16.msra.mxu0 0
      %754 = vmatprep.mubr.bf16.mxu0 0
      %755 = vmatmul.mubr.bf16.gmra.mxu0 %v644
      %v756 = vpop.f32.mrf.mxu0
      %v757 = vadd.f32 %v673, %v756
      %v758 = vpop.f32.mrf.mxu0
      %v759 = vpop.f32.mrf.mxu0
      %v760 = vadd.f32 %v673, %v759
      %v761 = vpop.f32.mrf.mxu0
      %762 = vmatprep.mubr.bf16.mxu0 0
      %763 = vmatmul.mubr.bf16.gmra.mxu0 %v645
      %v764 = vpop.f32.mrf.mxu0
      %v765 = vadd.f32 %v673, %v764
      %v766 = vpop.f32.mrf.mxu0
      %v767 = vpop.f32.mrf.mxu0
      %v768 = vadd.f32 %v673, %v767
      %v769 = vpop.f32.mrf.mxu0
      %770 = vmatprep.mubr.bf16.mxu0 0
      %771 = vmatmul.mubr.bf16.gmra.mxu0 %v646
      %v772 = vpop.f32.mrf.mxu0
      %v773 = vadd.f32 %v673, %v772
      %v774 = vpop.f32.mrf.mxu0
      %v775 = vpop.f32.mrf.mxu0
      %v776 = vadd.f32 %v673, %v775
      %v777 = vpop.f32.mrf.mxu0
      %778 = vmatprep.mubr.bf16.mxu0 0
      %779 = vmatmul.mubr.bf16.gmra.mxu0 %v647
      %v780 = vpop.f32.mrf.mxu0
      %v781 = vadd.f32 %v673, %v780
      %v782 = vpop.f32.mrf.mxu0
      %v783 = vpop.f32.mrf.mxu0
      %v784 = vadd.f32 %v673, %v783
      %v785 = vpop.f32.mrf.mxu0
      %786 = vmatprep.mubr.bf16.mxu0 0
      %787 = vmatmul.mubr.bf16.gmra.mxu0 %v648
      %v788 = vpop.f32.mrf.mxu0
      %v789 = vadd.f32 %v673, %v788
      %v790 = vpop.f32.mrf.mxu0
      %v791 = vpop.f32.mrf.mxu0
      %v792 = vadd.f32 %v673, %v791
      %v793 = vpop.f32.mrf.mxu0
      %794 = vmatprep.mubr.bf16.mxu0 0
      %795 = vmatmul.mubr.bf16.gmra.mxu0 %v649
      %v796 = vpop.f32.mrf.mxu0
      %v797 = vadd.f32 %v673, %v796
      %v798 = vpop.f32.mrf.mxu0
      %v799 = vpop.f32.mrf.mxu0
      %v800 = vadd.f32 %v673, %v799
      %v801 = vpop.f32.mrf.mxu0
      %802 = vmatprep.mubr.bf16.mxu0 0
      %803 = vmatmul.mubr.bf16.gmra.mxu0 %v650
      %v804 = vpop.f32.mrf.mxu0
      %v805 = vadd.f32 %v673, %v804
      %v806 = vpop.f32.mrf.mxu0
      %v807 = vpop.f32.mrf.mxu0
      %v808 = vadd.f32 %v673, %v807
      %v809 = vpop.f32.mrf.mxu0
      %810 = vmatprep.mubr.bf16.mxu0 0
      %811 = vmatmul.mubr.bf16.gmra.mxu0 %v651
      %v812 = vpop.f32.mrf.mxu0
      %v813 = vadd.f32 %v673, %v812
      %v814 = vpop.f32.mrf.mxu0
      %v815 = vpop.f32.mrf.mxu0
      %v816 = vadd.f32 %v673, %v815
      %v817 = vpop.f32.mrf.mxu0
      %818 = vdwg.mxu0
      %819 = vst [vmem:[%s172] sm:$0xff] %v757
      %820 = vst [vmem:[%s172 + $0x8] sm:$0xff] %v760
      %821 = vst [vmem:[%s172 + $0x10] sm:$0xff] %v765
      %822 = vst [vmem:[%s172 + $0x18] sm:$0xff] %v768
      %823 = vst [vmem:[%s172 + $0x20] sm:$0xff] %v773
      %824 = vst [vmem:[%s172 + $0x28] sm:$0xff] %v776
      %825 = vst [vmem:[%s172 + $0x30] sm:$0xff] %v781
      %826 = vst [vmem:[%s172 + $0x38] sm:$0xff] %v784
      %827 = vst [vmem:[%s172 + $0x40] sm:$0xff] %v789
      %828 = vst [vmem:[%s172 + $0x48] sm:$0xff] %v792
      %829 = vst [vmem:[%s172 + $0x50] sm:$0xff] %v797
      %830 = vst [vmem:[%s172 + $0x58] sm:$0xff] %v800
      %831 = vst [vmem:[%s172 + $0x60] sm:$0xff] %v805
      %832 = vst [vmem:[%s172 + $0x68] sm:$0xff] %v808
      %833 = vst [vmem:[%s172 + $0x70] sm:$0xff] %v813
      %834 = vst [vmem:[%s172 + $0x78] sm:$0xff] %v816
      %s835 = smul.u32 16, %s14
      %p836 = scmp.lt.s32.totalorder %s835, 31
      %s837 = scalar_select %p836, %s835, 31
      %s838 = smul.addr %s837, 8
      %s839 = scalar_lea.vmem %s3, %s838
      // Predicated region
      $region33: #{fully_connected_forward.1} parent=31 // pred_check
        %p840 = pneg %p100
      $region34: #{fully_connected_forward.1} parent=31 // pred_check_branch
        %842 = sbr.rel (%p840) target = $region36
      $region35: #{fully_connected_forward.1} parent=31 // pred_region
        %s843 = smul.u32 16, %s14
      $region36: #{fully_connected_forward.1} parent=31 // pred_fallthru
        _
    $region32: #{fully_connected_forward.1} parent=5 // pred_fallthru
      _
    %p844 = scmp.le.s32.totalorder 2, %s9
    // Predicated region
    $region37: #{fully_connected_forward.1} parent=5 // pred_check
      %p845 = pneg %p844
    $region38: #{fully_connected_forward.1} parent=5 // pred_check_branch
      %847 = sbr.rel (%p845) target = $region40
    $region39: #{fully_connected_forward.1} parent=5 // pred_region
      %s848 = ssub.s32 %s9, 2
      // Predicated region
      $region41: #{fully_connected_forward.1} parent=39 // pred_check
        %p849 = pneg %p106
      $region42: #{fully_connected_forward.1} parent=39 // pred_check_branch
        %851 = sbr.rel (%p849) target = $region44
      $region43: #{fully_connected_forward.1} parent=39 // pred_region
        %s852 = smul.u32 16, %s15
        %p853 = scmp.lt.s32.totalorder %s852, 31
        %s854 = scalar_select %p853, %s852, 31
        %s855 = smul.addr %s854, 8
        %s856 = scalar_lea.vmem %s3, %s855
      $region44: #{fully_connected_forward.1} parent=39 // pred_fallthru
        _
    $region40: #{fully_connected_forward.1} parent=5 // pred_fallthru
      _
  $region6: #{fully_connected_forward.1} parent=0 // loop_footer
    %s13 = sadd.s32 1, %s9
  $region7: #{fully_connected_forward.1} parent=0 // loop_footer_branch
    %8 = sbr.rel target = $region3
  $region8: #{fully_connected_forward.1} parent=0 // loop_exit
    _

</llo_original>
